<compile_context>
chip_gen: v5e
topology: v5e:2x2
jax: 0.10.0
libtpu: 0.0.40
codegen_flags: <defaults>
</compile_context>

<pallas_src>
import functools

import numpy as np
import jax
import jax.numpy as jnp
from jax.experimental import pallas as pl
from jax.experimental.pallas import tpu as pltpu


_SUBLANE = 8
_LANE = 128
# in + out blocks, double-buffered => 4 live tiles.  12 MiB of block buffers
# plus f32 temporaries stays below a 32 MiB scoped-VMEM limit on every
# generation (we raise v5e's 16 MiB default explicitly below).
_BLOCK_BUDGET_BYTES = 12 * 1024 * 1024
_VMEM_LIMIT_BYTES = 32 * 1024 * 1024
_MAX_TILE = 16384


def _round_up(x, m):
    return ((x + m - 1) // m) * m


def _pick_tile(full_dim, other_dim, itemsize, align):
    """Pick the tile length along the tiled axis for a (tile, other) block."""
    bytes_per_unit = 4 * other_dim * max(itemsize, 4)  # 4 live tiles, >=f32
    t = max(align, (_BLOCK_BUDGET_BYTES // bytes_per_unit) // align * align)
    t = min(t, _MAX_TILE, _round_up(full_dim, align))
    # Prefer at least 2 grid steps so the "parallel" grid axis can shard
    # across both TensorCores on dual-TC chips (v7x).
    if _round_up(full_dim, align) <= t and full_dim >= 2 * align:
        t = _round_up((full_dim + 1) // 2, align)
    return t


def _ln_lane_kernel(x_ref, w_ref, b_ref, o_ref, *, eps):
    """channels_last: x_ref (TR, C); reduce over the lane axis (C)."""
    x = x_ref[...].astype(jnp.float32)
    mean = jnp.mean(x, axis=-1, keepdims=True)
    xc = x - mean
    var = jnp.mean(xc * xc, axis=-1, keepdims=True)       # biased variance
    inv = jax.lax.rsqrt(var + eps)
    w = w_ref[...].astype(jnp.float32)                     # (1, C)
    b = b_ref[...].astype(jnp.float32)
    o_ref[...] = (xc * inv * w + b).astype(o_ref.dtype)


def _ln_sublane_kernel(x_ref, w_ref, b_ref, o_ref, *, eps):
    """channels_first: x_ref (TN, C, TL); reduce over the sublane axis (C)."""
    x = x_ref[...].astype(jnp.float32)
    mean = jnp.mean(x, axis=1, keepdims=True)              # (TN, 1, TL)
    xc = x - mean
    var = jnp.mean(xc * xc, axis=1, keepdims=True)         # biased variance
    inv = jax.lax.rsqrt(var + eps)
    w = w_ref[...].astype(jnp.float32)                     # (1, C, 1)
    b = b_ref[...].astype(jnp.float32)
    o_ref[...] = (xc * inv * w + b).astype(o_ref.dtype)


def pallas_layer_norm(x, weight, bias, eps=1e-6, data_format="channels_last"):
    """LayerNorm over the channel axis.

    channels_last : x shape (..., C)
    channels_first: x shape (N, C, H, W)
    """
    if data_format not in ("channels_last", "channels_first"):
        raise NotImplementedError

    eps = float(eps)
    itemsize = jnp.dtype(x.dtype).itemsize

    if data_format == "channels_last":
        orig_shape = x.shape
        C = orig_shape[-1]
        rows = int(np.prod(orig_shape[:-1])) if len(orig_shape) > 1 else 1
        x2 = x.reshape(rows, C)
        w2 = weight.reshape(1, C)   # keep original (f32) dtype
        b2 = bias.reshape(1, C)

        TR = _pick_tile(rows, C, itemsize, _SUBLANE)
        grid = (pl.cdiv(rows, TR),)

        out = pl.pallas_call(
            functools.partial(_ln_lane_kernel, eps=eps),
            out_shape=jax.ShapeDtypeStruct((rows, C), x.dtype),
            grid=grid,
            in_specs=[
                pl.BlockSpec((TR, C), lambda i: (i, 0)),
                pl.BlockSpec((1, C), lambda i: (0, 0)),
                pl.BlockSpec((1, C), lambda i: (0, 0)),
            ],
            out_specs=pl.BlockSpec((TR, C), lambda i: (i, 0)),
            compiler_params=pltpu.CompilerParams(
                dimension_semantics=("parallel",),
                vmem_limit_bytes=_VMEM_LIMIT_BYTES),
        )(x2, w2, b2)
        return out.reshape(orig_shape)

    # channels_first: (N, C, H, W) -> view as (N, C, H*W).  Reduce over C on
    # the sublane axis, keep H*W lane-dense.  Pure reshapes only (no copies).
    N, C = x.shape[0], x.shape[1]
    HW = int(np.prod(x.shape[2:])) if x.ndim > 2 else 1
    x3 = x.reshape(N, C, HW)
    w3 = weight.reshape(1, C, 1)
    b3 = bias.reshape(1, C, 1)

    TL = _pick_tile(HW, C, itemsize, _LANE)
    l_steps = pl.cdiv(HW, TL)

    # Batch several images per block when one image's (C, TL) slab is small,
    # keeping total live block bytes within the budget.
    bytes_per_image = 4 * C * TL * max(itemsize, 4)
    TN = max(1, _BLOCK_BUDGET_BYTES // bytes_per_image)
    TN = min(TN, N)
    if l_steps == 1 and TN >= N and N >= 2:
        TN = (N + 1) // 2          # keep >=2 grid steps for megacore sharding
    grid = (pl.cdiv(N, TN), l_steps)

    out = pl.pallas_call(
        functools.partial(_ln_sublane_kernel, eps=eps),
        out_shape=jax.ShapeDtypeStruct((N, C, HW), x.dtype),
        grid=grid,
        in_specs=[
            pl.BlockSpec((TN, C, TL), lambda n, l: (n, 0, l)),
            pl.BlockSpec((1, C, 1), lambda n, l: (0, 0, 0)),
            pl.BlockSpec((1, C, 1), lambda n, l: (0, 0, 0)),
        ],
        out_specs=pl.BlockSpec((TN, C, TL), lambda n, l: (n, 0, l)),
        compiler_params=pltpu.CompilerParams(
            dimension_semantics=("parallel", "parallel"),
            vmem_limit_bytes=_VMEM_LIMIT_BYTES),
    )(x3, w3, b3)
    return out.reshape(x.shape)


def _reference_layer_norm(x, weight, bias, eps, data_format):
    # Pure-JAX reference matching the PyTorch module semantics (f32 math).
    x = x.astype(jnp.float32)
    weight = weight.astype(jnp.float32)
    bias = bias.astype(jnp.float32)
    if data_format == "channels_last":
        mean = jnp.mean(x, axis=-1, keepdims=True)
        var = jnp.mean((x - mean) ** 2, axis=-1, keepdims=True)
        xn = (x - mean) / jnp.sqrt(var + eps)
        return xn * weight + bias
    else:  # channels_first, NCHW
        u = jnp.mean(x, axis=1, keepdims=True)
        s = jnp.mean((x - u) ** 2, axis=1, keepdims=True)
        xn = (x - u) / jnp.sqrt(s + eps)
        return weight[None, :, None, None] * xn + bias[None, :, None, None]


if __name__ == "__main__":
    key = jax.random.PRNGKey(0)
    k1, k2, k3, k4, k5, k6 = jax.random.split(key, 6)
    eps = 1e-6

    # --- channels_first: x is NCHW, C = 4 (tiny C stays lane-dense) ---
    C1 = 4
    x_cf = jax.random.normal(k1, (2, C1, 16, 16), dtype=jnp.float32)
    w_cf = jnp.ones((C1,), jnp.float32) + 0.1 * jax.random.normal(k2, (C1,))
    b_cf = 0.05 * jax.random.normal(k3, (C1,))

    out_cf = jax.block_until_ready(
        pallas_layer_norm(x_cf, w_cf, b_cf, eps=eps,
                          data_format="channels_first"))
    ref_cf = _reference_layer_norm(x_cf, w_cf, b_cf, eps, "channels_first")
    np.testing.assert_allclose(np.asarray(out_cf), np.asarray(ref_cf),
                               rtol=1e-5, atol=1e-5)

    # --- channels_last: NHWC, C = 32 (general path, C not lane-dense) ---
    C2 = 32
    x_cl = jax.random.normal(k4, (2, 8, 8, C2), dtype=jnp.float32)
    w_cl = jnp.ones((C2,), jnp.float32) + 0.1 * jax.random.normal(k5, (C2,))
    b_cl = 0.05 * jnp.ones((C2,), jnp.float32)

    out_cl = jax.block_until_ready(
        pallas_layer_norm(x_cl, w_cl, b_cl, eps=eps,
                          data_format="channels_last"))
    ref_cl = _reference_layer_norm(x_cl, w_cl, b_cl, eps, "channels_last")
    np.testing.assert_allclose(np.asarray(out_cl), np.asarray(ref_cl),
                               rtol=1e-5, atol=1e-5)

    # --- channels_last: NHWC, C = 128 (lane-dense case) ---
    C3 = 128
    x_cl2 = jax.random.normal(k2, (2, 4, 4, C3), dtype=jnp.float32)
    w_cl2 = jnp.ones((C3,), jnp.float32)
    b_cl2 = jnp.zeros((C3,), jnp.float32)

    out_cl2 = jax.block_until_ready(
        pallas_layer_norm(x_cl2, w_cl2, b_cl2, eps=eps,
                          data_format="channels_last"))
    ref_cl2 = _reference_layer_norm(x_cl2, w_cl2, b_cl2, eps, "channels_last")
    np.testing.assert_allclose(np.asarray(out_cl2), np.asarray(ref_cl2),
                               rtol=1e-5, atol=1e-5)

    # --- channels_last, bf16 activations with f32 affine (ConvNeXt-style) ---
    C4 = 96
    x_bf = jax.random.normal(k6, (2, 8, 8, C4), dtype=jnp.float32).astype(
        jnp.bfloat16)
    w_bf = jnp.ones((C4,), jnp.float32) + 0.1 * jax.random.normal(k3, (C4,))
    b_bf = 0.05 * jax.random.normal(k5, (C4,))

    out_bf = jax.block_until_ready(
        pallas_layer_norm(x_bf, w_bf, b_bf, eps=eps,
                          data_format="channels_last"))
    ref_bf = _reference_layer_norm(x_bf, w_bf, b_bf, eps, "channels_last")
    np.testing.assert_allclose(np.asarray(out_bf, dtype=np.float32),
                               np.asarray(ref_bf),
                               rtol=5e-2, atol=5e-2)

    print("KERNEL_OK")
</pallas_src>

<mosaic_0001>
module attributes {stable_mosaic.version = 11 : i64} {
  func.func @_ln_sublane_kernel(%arg0: i32, %arg1: i32, %arg2: memref<2x4x128xf32, #tpu.memory_space<vmem>>, %arg3: memref<1x4x1xf32, #tpu.memory_space<vmem>>, %arg4: memref<1x4x1xf32, #tpu.memory_space<vmem>>, %arg5: memref<2x4x128xf32, #tpu.memory_space<vmem>>) attributes {dimension_semantics = [#tpu.dimension_semantics<parallel>, #tpu.dimension_semantics<parallel>], iteration_bounds = array<i64: 1, 2>, scalar_prefetch = 0 : i64, scratch_operands = 0 : i64, tpu.core_type = #tpu.core_type<tc>, window_params = [{transform_indices = @transform_0, window_bounds = array<i64: 2, 4, 128>}, {pipeline_mode = #tpu.pipeline_mode<synchronous>, transform_indices = @transform_1, window_bounds = array<i64: 1, 4, 1>}, {pipeline_mode = #tpu.pipeline_mode<synchronous>, transform_indices = @transform_2, window_bounds = array<i64: 1, 4, 1>}, {transform_indices = @transform_3, window_bounds = array<i64: 2, 4, 128>}]} {
    %c0 = arith.constant 0 : index
    %c0_0 = arith.constant 0 : index
    %c0_1 = arith.constant 0 : index
    %0 = vector.load %arg2[%c0, %c0_0, %c0_1] : memref<2x4x128xf32, #tpu.memory_space<vmem>>, vector<2x4x128xf32>
    %cst = arith.constant dense<0.000000e+00> : vector<2x128xf32>
    %1 = vector.multi_reduction <add>, %0, %cst [1] : vector<2x4x128xf32> to vector<2x128xf32>
    %2 = vector.shape_cast %1 : vector<2x128xf32> to vector<2x1x128xf32>
    %cst_2 = arith.constant 4.000000e+00 : f32
    %3 = vector.broadcast %cst_2 : f32 to vector<2x1x128xf32>
    %4 = arith.divf %2, %3 : vector<2x1x128xf32>
    %5 = vector.broadcast %4 : vector<2x1x128xf32> to vector<2x4x128xf32>
    %6 = arith.subf %0, %5 : vector<2x4x128xf32>
    %7 = arith.mulf %6, %6 : vector<2x4x128xf32>
    %cst_3 = arith.constant dense<0.000000e+00> : vector<2x128xf32>
    %8 = vector.multi_reduction <add>, %7, %cst_3 [1] : vector<2x4x128xf32> to vector<2x128xf32>
    %9 = vector.shape_cast %8 : vector<2x128xf32> to vector<2x1x128xf32>
    %cst_4 = arith.constant 4.000000e+00 : f32
    %10 = vector.broadcast %cst_4 : f32 to vector<2x1x128xf32>
    %11 = arith.divf %9, %10 : vector<2x1x128xf32>
    %cst_5 = arith.constant 9.99999997E-7 : f32
    %12 = vector.broadcast %cst_5 : f32 to vector<2x1x128xf32>
    %13 = arith.addf %11, %12 : vector<2x1x128xf32>
    %14 = math.rsqrt %13 : vector<2x1x128xf32>
    %c0_6 = arith.constant 0 : index
    %c0_7 = arith.constant 0 : index
    %c0_8 = arith.constant 0 : index
    %15 = vector.load %arg3[%c0_6, %c0_7, %c0_8] : memref<1x4x1xf32, #tpu.memory_space<vmem>>, vector<1x4x1xf32>
    %c0_9 = arith.constant 0 : index
    %c0_10 = arith.constant 0 : index
    %c0_11 = arith.constant 0 : index
    %16 = vector.load %arg4[%c0_9, %c0_10, %c0_11] : memref<1x4x1xf32, #tpu.memory_space<vmem>>, vector<1x4x1xf32>
    %17 = vector.broadcast %14 : vector<2x1x128xf32> to vector<2x4x128xf32>
    %18 = arith.mulf %6, %17 : vector<2x4x128xf32>
    %19 = vector.broadcast %15 : vector<1x4x1xf32> to vector<2x4x128xf32>
    %20 = arith.mulf %18, %19 : vector<2x4x128xf32>
    %21 = vector.broadcast %16 : vector<1x4x1xf32> to vector<2x4x128xf32>
    %22 = arith.addf %20, %21 : vector<2x4x128xf32>
    %c0_12 = arith.constant 0 : index
    %c0_13 = arith.constant 0 : index
    %c0_14 = arith.constant 0 : index
    %23 = vector.load %arg5[%c0_12, %c0_13, %c0_14] : memref<2x4x128xf32, #tpu.memory_space<vmem>>, vector<2x4x128xf32>
    tpu.vector_store %arg5[%c0_12, %c0_13, %c0_14], %22 {strides = array<i32>} : memref<2x4x128xf32, #tpu.memory_space<vmem>>, vector<2x4x128xf32>,
    return
  }
  func.func @transform_0(%arg0: i32, %arg1: i32) -> (i32, i32, i32) {
    %c0_i32 = arith.constant 0 : i32
    %c0_i32_0 = arith.constant 0 : i32
    return %arg0, %c0_i32, %arg1 : i32, i32, i32
  }
  func.func @transform_1(%arg0: i32, %arg1: i32) -> (i32, i32, i32) {
    %c0_i32 = arith.constant 0 : i32
    %c0_i32_0 = arith.constant 0 : i32
    %c0_i32_1 = arith.constant 0 : i32
    %c0_i32_2 = arith.constant 0 : i32
    return %c0_i32, %c0_i32_0, %c0_i32_1 : i32, i32, i32
  }
  func.func @transform_2(%arg0: i32, %arg1: i32) -> (i32, i32, i32) {
    %c0_i32 = arith.constant 0 : i32
    %c0_i32_0 = arith.constant 0 : i32
    %c0_i32_1 = arith.constant 0 : i32
    %c0_i32_2 = arith.constant 0 : i32
    return %c0_i32, %c0_i32_0, %c0_i32_1 : i32, i32, i32
  }
  func.func @transform_3(%arg0: i32, %arg1: i32) -> (i32, i32, i32) {
    %c0_i32 = arith.constant 0 : i32
    %c0_i32_0 = arith.constant 0 : i32
    return %arg0, %c0_i32, %arg1 : i32, i32, i32
  }
}

</mosaic_0001>

<llo_original>
// kernel: tpu_custom_call.1
$region0: #{tpu_custom_call.1}
  #allocation0 [shape = 'u32[]', space=smem, size = 0x4, offset = 0x4, fixed_abs, tag = 'smem constant byte address 0x4 - core index']
  #allocation1 [shape = 'u32[72,128]{1,0:T(1,128)}', space=vmem, size = 0x9000, scoped, tag = 'internal scratch']
  %s0 = inlined_call_operand.hbm [shape: f32[2,4,256], index: 0, kind: input, shape index: {}]
  %s1 = inlined_call_operand.vmem [shape: f32[1,4,1], index: 1, kind: input, shape index: {}]
  %s2 = inlined_call_operand.vmem [shape: f32[1,4,1], index: 2, kind: input, shape index: {}]
  %s3 = inlined_call_operand.hbm [shape: f32[2,4,256], index: 3, kind: output, shape index: {}]
  %s4 = sld [smem:[#allocation0]]
  $region49: #{tpu_custom_call.1} parent=0
    _
  %s6 = ssub.s32 1, %s4
  %s7 = scalar_select 0, %s6, %s4
  $region1: #{tpu_custom_call.1} parent=0
    #allocation2 [shape = 'u8[8192]{0}', space=vmem, size = 0x2000, scoped, tag = 'input window, operand 0']
    #allocation3 [shape = 's32[2]{0}', space=sflag, size = 0x8, scoped, tag = 'scoped memory for tpu_custom_call.1']
    #allocation4 [shape = 's32[2]{0}', space=sflag, size = 0x8, scoped, tag = 'scoped memory for tpu_custom_call.1']
    #allocation5 [shape = 'u8[8192]{0}', space=vmem, size = 0x2000, scoped, tag = 'output window, operand 0']
    %8 = vsyncpa [#allocation3], 0
    %s9 = scalar_lea.sflag [#allocation3], 1
    %10 = vsyncpa %s9, 0
    %11 = vsyncpa [#allocation4], 0
    %s12 = scalar_lea.sflag [#allocation4], 1
    %13 = vsyncpa %s12, 0
    loop: start=0, step=1, limit=4
    $region2: #{tpu_custom_call.1} parent=1 // loop_pre_header
      _
    $region3: #{tpu_custom_call.1} parent=1 // loop_header
      %s15 = sphi 0, %s19
      %p16 = scmp.ge.s32.totalorder %s15, 4
      %s22 = sphi 0, %s34
      %s23 = sphi 0, %s30
      %s24 = sphi 0, %s22
      %s25 = sphi 0, %s23
      %s26 = sphi 0, %s24
      %s27 = sphi 0, %s25
      %s39 = sphi 0, %s41
      %s42 = sphi 0, %s39
      %s43 = sphi 0, %s42
      %s59 = sphi 0, %s43
      %s63 = sphi 0, %s63
      %s65 = sphi 0, %s63
      %s66 = sphi 0, %s65
      %s80 = sphi 0, %s66
      %s84 = sphi 0, %s84
      %s86 = sphi 0, %s84
      %s87 = sphi 0, %s86
      %s101 = sphi 0, %s87
      %s109 = sphi 0, %s111
      %s112 = sphi 0, %s109
      %s113 = sphi 0, %s112
      %s129 = sphi 0, %s113
    $region4: #{tpu_custom_call.1} parent=1 // loop_header_branch
      %18 = sbr.rel (%p16) target = $region8
    $region5: #{tpu_custom_call.1} parent=1 // loop_body
      %s20 = ssub.s32 %s15, 1
      %s21 = ssub.s32 %s15, 2
      %s28 = sadd.s32 1, %s23
      %p29 = scmp.ge.s32.totalorder %s28, 2
      %s30 = scalar_select %p29, 0, %s28
      %s31 = sadd.s32 1, %s22
      %s32 = scalar_select %p29, %s31, %s22
      %p33 = scmp.ge.s32.totalorder %s32, 1
      %s34 = scalar_select %p33, 0, %s32
      %s35 = ssub.s32 %s22, %s34
      %s36 = ssub.s32 %s23, %s30
      %s37 = sor.u32 %s35, %s36
      %p38 = scmp.eq.s32.totalorder %s37, 0
      %s40 = sadd.s32 %s39, 1
      %s41 = scalar_select %p38, %s39, %s40
      %p44 = pneg %p38
      %p45 = scmp.eq.s32.totalorder %s15, 1
      %p46 = por %p44, %p45
      %p47 = scmp.ne.s32.totalorder %s39, %s42
      %p48 = scmp.eq.s32.totalorder %s15, 0
      %p49 = por %p47, %p48
      %p50 = scmp.ne.s32.totalorder %s39, %s42
      %p51 = scmp.eq.s32.totalorder %s20, 1
      %p52 = por %p50, %p51
      %p53 = scmp.ne.s32.totalorder %s42, %s43
      %p54 = scmp.eq.s32.totalorder %s20, 0
      %p55 = por %p53, %p54
      %p56 = scmp.ne.s32.totalorder %s42, %s43
      %p57 = scmp.eq.s32.totalorder %s21, 1
      %p58 = por %p56, %p57
      %p60 = scmp.ne.s32.totalorder %s43, %s59
      %p61 = scmp.eq.s32.totalorder %s21, 0
      %p62 = por %p60, %p61
      %s64 = sadd.s32 %s63, 1
      %p67 = scmp.eq.s32.totalorder %s15, 1
      %p68 = scmp.ne.s32.totalorder %s63, %s65
      %p69 = scmp.eq.s32.totalorder %s15, 0
      %p70 = por %p68, %p69
      %p71 = scmp.ne.s32.totalorder %s63, %s65
      %p72 = scmp.eq.s32.totalorder %s20, 1
      %p73 = por %p71, %p72
      %p74 = scmp.ne.s32.totalorder %s65, %s66
      %p75 = scmp.eq.s32.totalorder %s20, 0
      %p76 = por %p74, %p75
      %p77 = scmp.ne.s32.totalorder %s65, %s66
      %p78 = scmp.eq.s32.totalorder %s21, 1
      %p79 = por %p77, %p78
      %p81 = scmp.ne.s32.totalorder %s66, %s80
      %p82 = scmp.eq.s32.totalorder %s21, 0
      %p83 = por %p81, %p82
      %s85 = sadd.s32 %s84, 1
      %p88 = scmp.eq.s32.totalorder %s15, 1
      %p89 = scmp.ne.s32.totalorder %s84, %s86
      %p90 = scmp.eq.s32.totalorder %s15, 0
      %p91 = por %p89, %p90
      %p92 = scmp.ne.s32.totalorder %s84, %s86
      %p93 = scmp.eq.s32.totalorder %s20, 1
      %p94 = por %p92, %p93
      %p95 = scmp.ne.s32.totalorder %s86, %s87
      %p96 = scmp.eq.s32.totalorder %s20, 0
      %p97 = por %p95, %p96
      %p98 = scmp.ne.s32.totalorder %s86, %s87
      %p99 = scmp.eq.s32.totalorder %s21, 1
      %p100 = por %p98, %p99
      %p102 = scmp.ne.s32.totalorder %s87, %s101
      %p103 = scmp.eq.s32.totalorder %s21, 0
      %p104 = por %p102, %p103
      %s105 = ssub.s32 %s22, %s34
      %s106 = ssub.s32 %s23, %s30
      %s107 = sor.u32 %s105, %s106
      %p108 = scmp.eq.s32.totalorder %s107, 0
      %s110 = sadd.s32 %s109, 1
      %s111 = scalar_select %p108, %s109, %s110
      %p114 = pneg %p108
      %p115 = scmp.eq.s32.totalorder %s15, 1
      %p116 = por %p114, %p115
      %p117 = scmp.ne.s32.totalorder %s109, %s112
      %p118 = scmp.eq.s32.totalorder %s15, 0
      %p119 = por %p117, %p118
      %p120 = scmp.ne.s32.totalorder %s109, %s112
      %p121 = scmp.eq.s32.totalorder %s20, 1
      %p122 = por %p120, %p121
      %p123 = scmp.ne.s32.totalorder %s112, %s113
      %p124 = scmp.eq.s32.totalorder %s20, 0
      %p125 = por %p123, %p124
      %p126 = scmp.ne.s32.totalorder %s112, %s113
      %p127 = scmp.eq.s32.totalorder %s21, 1
      %p128 = por %p126, %p127
      %p130 = scmp.ne.s32.totalorder %s113, %s129
      %p131 = scmp.eq.s32.totalorder %s21, 0
      %p132 = por %p130, %p131
      %p133 = scmp.le.s32.totalorder 1, %s15
      %p134 = scmp.lt.s32.totalorder %s15, 3
      %p135 = pnand %p133, %p134
      %p136 = pneg %p135
      // Predicated region
      $region9: #{tpu_custom_call.1} parent=5 // pred_check
        _
      $region10: #{tpu_custom_call.1} parent=5 // pred_check_branch
        %138 = sbr.rel (%p135) target = $region12
      $region11: #{tpu_custom_call.1} parent=5 // pred_region
        %s139 = ssub.s32 %s15, 1
        // Predicated region
        $region13: #{tpu_custom_call.1} parent=11 // pred_check
          %p140 = pneg %p76
        $region14: #{tpu_custom_call.1} parent=11 // pred_check_branch
          %142 = sbr.rel (%p140) target = $region16
        $region15: #{tpu_custom_call.1} parent=11 // pred_region
          _
        $region16: #{tpu_custom_call.1} parent=11 // pred_fallthru
          _
        // Predicated region
        $region17: #{tpu_custom_call.1} parent=11 // pred_check
          %p143 = pneg %p97
        $region18: #{tpu_custom_call.1} parent=11 // pred_check_branch
          %145 = sbr.rel (%p143) target = $region20
        $region19: #{tpu_custom_call.1} parent=11 // pred_region
          _
        $region20: #{tpu_custom_call.1} parent=11 // pred_fallthru
          _
      $region12: #{tpu_custom_call.1} parent=5 // pred_fallthru
        _
      %p146 = scmp.lt.s32.totalorder %s15, 2
      // Predicated region
      $region21: #{tpu_custom_call.1} parent=5 // pred_check
        %p147 = pneg %p146
      $region22: #{tpu_custom_call.1} parent=5 // pred_check_branch
        %149 = sbr.rel (%p147) target = $region24
      $region23: #{tpu_custom_call.1} parent=5 // pred_region
        // Predicated region
        $region25: #{tpu_custom_call.1} parent=23 // pred_check
          %p150 = pneg %p49
        $region26: #{tpu_custom_call.1} parent=23 // pred_check_branch
          %152 = sbr.rel (%p150) target = $region28
        $region27: #{tpu_custom_call.1} parent=23 // pred_region
          %s153 = sand.u32 %s39, 1
          %s154 = scalar_lea.sflag [#allocation3], %s153
          %s155 = sand.u32 %s39, 1
          %s156 = smul.addr %s155, 8
          %s157 = scalar_lea.vmem [#allocation2], %s156
          %s158 = smul.u32 2, %s22
          %160 = vsyncadd %s154, 0
          %s161 = smul.addr %s158, 2
          %s162 = sadd.s32 %s23, %s161
          %s163 = smul.addr %s162, 4
          %s164 = scalar_lea.hbm %s0, %s163
          %s165 = sshll.u32 %s164, 4
          %s166 = int_to_ptr.hbm [resolvable:$true] %s165
          %s167 = sshll.u32 %s157, 4
          %s168 = int_to_ptr.vmem [resolvable:$true] %s167
          %173 = dma.hbm_to_vmem [thread:$0]  %s166, 128, %s168, %s154, 128, 64, 4
        $region28: #{tpu_custom_call.1} parent=23 // pred_fallthru
          _
      $region24: #{tpu_custom_call.1} parent=5 // pred_fallthru
        _
      %p174 = scmp.le.s32.totalorder 1, %s15
      %p175 = scmp.lt.s32.totalorder %s15, 3
      %p176 = pnand %p174, %p175
      %p177 = pneg %p176
      // Predicated region
      $region29: #{tpu_custom_call.1} parent=5 // pred_check
        _
      $region30: #{tpu_custom_call.1} parent=5 // pred_check_branch
        %179 = sbr.rel (%p176) target = $region32
      $region31: #{tpu_custom_call.1} parent=5 // pred_region
        %s180 = ssub.s32 %s15, 1
        %s181 = sand.u32 %s42, 1
        %s182 = scalar_lea.sflag [#allocation3], %s181
        %s183 = sand.u32 %s42, 1
        %s184 = smul.addr %s183, 8
        %s185 = scalar_lea.vmem [#allocation2], %s184
        // Predicated region
        $region33: #{tpu_custom_call.1} parent=31 // pred_check
          %p186 = pneg %p55
        $region34: #{tpu_custom_call.1} parent=31 // pred_check_branch
          %188 = sbr.rel (%p186) target = $region36
        $region35: #{tpu_custom_call.1} parent=31 // pred_region
          %190 = dma.done %s182, 128
        $region36: #{tpu_custom_call.1} parent=31 // pred_fallthru
          _
        %s191 = sand.u32 %s42, 1
        %s192 = scalar_lea.sflag [#allocation3], %s191
        %s193 = sand.u32 %s42, 1
        %s194 = smul.addr %s193, 8
        %s195 = scalar_lea.vmem [#allocation2], %s194
        %p196 = pneg %p55
        %p197 = pneg %p52
        %p198 = pneg %p76
        %p199 = pneg %p73
        %p200 = pneg %p97
        %p201 = pneg %p94
        %p202 = pneg %p125
        %p203 = pneg %p122
        %s204 = sand.u32 %s112, 1
        %s205 = scalar_lea.sflag [#allocation4], %s204
        %s206 = sand.u32 %s112, 1
        %s207 = smul.addr %s206, 8
        %s208 = scalar_lea.vmem [#allocation5], %s207
        %s209 = smul.u32 2, %s24
        %s210 = smul.u32 2, %s24
        %v211 = vld [vmem:[%s185] sm:$0xf]
        %v212 = vld [vmem:[%s185 + $0x4] sm:$0xf]
        %vm213 = vcmask 1043456
        %v214 = vsel %vm213, %v211, 0.0
        %v215 = vrot.slane %v214, 4
        %v216 = vadd.f32 %v214, %v215
        %v217 = vrot.slane %v216, 2
        %v218 = vadd.f32 %v216, %v217
        %v219 = vrot.slane %v218, 1
        %v220 = vadd.f32 %v218, %v219
        %v221 = vsel %vm213, %v212, 0.0
        %v222 = vrot.slane %v221, 4
        %v223 = vadd.f32 %v221, %v222
        %v224 = vrot.slane %v223, 2
        %v225 = vadd.f32 %v223, %v224
        %v226 = vrot.slane %v225, 1
        %v227 = vadd.f32 %v225, %v226
        %v228 = vrcp.pop 4.0
        %v229 = vmul.f32 4.0, %v228
        %v230 = vsub.f32 1.0, %v229
        %v231 = vmul.f32 %v228, %v230
        %v232 = vadd.f32 %v228, %v231
        %vm233 = vweird.f32 %v228
        %v234 = vsel %vm233, %v228, %v232
        %v235 = vmul.f32 %v220, %v234
        %v236 = vmul.f32 %v227, %v234
        %v237 = vsub.f32 %v211, %v235
        %v238 = vsub.f32 %v212, %v236
        %v239 = vmul.f32 %v237, %v237
        %v240 = vmul.f32 %v238, %v238
        %v241 = vsel %vm213, %v239, 0.0
        %v242 = vrot.slane %v241, 4
        %v243 = vadd.f32 %v241, %v242
        %v244 = vrot.slane %v243, 2
        %v245 = vadd.f32 %v243, %v244
        %v246 = vrot.slane %v245, 1
        %v247 = vadd.f32 %v245, %v246
        %v248 = vsel %vm213, %v240, 0.0
        %v249 = vrot.slane %v248, 4
        %v250 = vadd.f32 %v248, %v249
        %v251 = vrot.slane %v250, 2
        %v252 = vadd.f32 %v250, %v251
        %v253 = vrot.slane %v252, 1
        %v254 = vadd.f32 %v252, %v253
        %v255 = vmul.f32 %v247, %v234
        %v256 = vmul.f32 %v254, %v234
        %v257 = vadd.f32 %v255, 1e-06
        %v258 = vadd.f32 %v256, 1e-06
        %v259 = vrsqrt.pop %v257
        %v260 = vmul.f32 %v259, %v257
        %v261 = vmul.f32 %v260, %v259
        %v262 = vmul.f32 0.5, %v261
        %v263 = vsub.f32 1.5, %v262
        %v264 = vmul.f32 %v259, %v263
        %vm265 = vweird.f32 %v257
        %vm266 = vweird.f32 %v259
        %vm267 = vmor %vm265, %vm266
        %v268 = vsel %vm267, %v259, %v264
        %v269 = vrsqrt.pop %v258
        %v270 = vmul.f32 %v269, %v258
        %v271 = vmul.f32 %v270, %v269
        %v272 = vmul.f32 0.5, %v271
        %v273 = vsub.f32 1.5, %v272
        %v274 = vmul.f32 %v269, %v273
        %vm275 = vweird.f32 %v258
        %vm276 = vweird.f32 %v269
        %vm277 = vmor %vm275, %vm276
        %v278 = vsel %vm277, %v269, %v274
        %v279 = vld [vmem:[%s1] sm:$0xf]
        %v280 = vld [vmem:[%s2] sm:$0xf]
        %v281 = vmul.f32 %v237, %v268
        %v282 = vmul.f32 %v238, %v278
        %284 = vset.pattern.permute.xlu0 0
        %285 = vperm.xlu0 %284, %v279
        %v286 = vpop.permute.xlu0 %285
        %v288 = vmul.f32 %v281, %v286
        %v289 = vmul.f32 %v282, %v286
        %291 = vset.pattern.permute.xlu0 0
        %292 = vperm.xlu0 %291, %v280
        %v293 = vpop.permute.xlu0 %292
        %v295 = vadd.f32 %v288, %v293
        %v296 = vadd.f32 %v289, %v293
        %297 = vst [vmem:[%s208] sm:$0xf] %v295
        %298 = vst [vmem:[%s208 + $0x4] sm:$0xf] %v296
        %s299 = sand.u32 %s112, 1
        %s300 = scalar_lea.sflag [#allocation4], %s299
        %s301 = sand.u32 %s112, 1
        %s302 = smul.addr %s301, 8
        %s303 = scalar_lea.vmem [#allocation5], %s302
        // Predicated region
        $region37: #{tpu_custom_call.1} parent=31 // pred_check
          %p304 = pneg %p122
        $region38: #{tpu_custom_call.1} parent=31 // pred_check_branch
          %306 = sbr.rel (%p304) target = $region40
        $region39: #{tpu_custom_call.1} parent=31 // pred_region
          %s307 = smul.u32 2, %s24
          %309 = vsyncadd %s300, 0
          %s310 = smul.addr %s307, 2
          %s311 = sadd.s32 %s25, %s310
          %s312 = smul.addr %s311, 4
          %s313 = scalar_lea.hbm %s3, %s312
          %s314 = sshll.u32 %s303, 4
          %s315 = int_to_ptr.vmem [resolvable:$true] %s314
          %s316 = sshll.u32 %s313, 4
          %s317 = int_to_ptr.hbm [resolvable:$true] %s316
          %322 = dma.vmem_to_hbm [thread:$0]  %s315, 128, %s317, %s300, 64, 128, 4
        $region40: #{tpu_custom_call.1} parent=31 // pred_fallthru
          _
      $region32: #{tpu_custom_call.1} parent=5 // pred_fallthru
        _
      %p323 = scmp.le.s32.totalorder 2, %s15
      // Predicated region
      $region41: #{tpu_custom_call.1} parent=5 // pred_check
        %p324 = pneg %p323
      $region42: #{tpu_custom_call.1} parent=5 // pred_check_branch
        %326 = sbr.rel (%p324) target = $region44
      $region43: #{tpu_custom_call.1} parent=5 // pred_region
        %s327 = ssub.s32 %s15, 2
        // Predicated region
        $region45: #{tpu_custom_call.1} parent=43 // pred_check
          %p328 = pneg %p128
        $region46: #{tpu_custom_call.1} parent=43 // pred_check_branch
          %330 = sbr.rel (%p328) target = $region48
        $region47: #{tpu_custom_call.1} parent=43 // pred_region
          %s331 = sand.u32 %s113, 1
          %s332 = scalar_lea.sflag [#allocation4], %s331
          %s333 = sand.u32 %s113, 1
          %s334 = smul.addr %s333, 8
          %s335 = scalar_lea.vmem [#allocation5], %s334
          %337 = dma.done %s332, 128
        $region48: #{tpu_custom_call.1} parent=43 // pred_fallthru
          _
      $region44: #{tpu_custom_call.1} parent=5 // pred_fallthru
        _
    $region6: #{tpu_custom_call.1} parent=1 // loop_footer
      %s19 = sadd.s32 1, %s15
    $region7: #{tpu_custom_call.1} parent=1 // loop_footer_branch
      %14 = sbr.rel target = $region3
    $region8: #{tpu_custom_call.1} parent=1 // loop_exit
      _
    %338 = vsyncpa [#allocation3], 1
    %s339 = scalar_lea.sflag [#allocation3], 1
    %340 = vsyncpa %s339, 1
    %341 = vsyncpa [#allocation4], 1
    %s342 = scalar_lea.sflag [#allocation4], 1
    %343 = vsyncpa %s342, 1

</llo_original>
